<compile_context>
chip_gen: v5e
topology: v5e:2x2
jax: 0.10.0
libtpu: 0.0.40
codegen_flags: <defaults>
</compile_context>

<pallas_src>
import jax
import jax.numpy as jnp
from jax.experimental import pallas as pl
from jax.experimental.pallas import tpu as pltpu

EPS = 1e-10


def _l1norm_kernel(x_ref, o_ref):
    # x_ref / o_ref: (bn, D) tile in VMEM.
    x = x_ref[...]
    xf = x.astype(jnp.float32)                              # no-op for f32 input
    # Reduction over the feature axis (PyTorch dim=1), in f32.
    abs_sum = jnp.sum(jnp.abs(xf), axis=1, keepdims=True)   # (bn, 1) f32
    # Exact row-wise reciprocal (approx=True would drift past 1e-6), then a
    # cheap broadcast multiply on the VPU; single cast on store.
    inv = pl.reciprocal(abs_sum + EPS, approx=False)        # (bn, 1) f32
    o_ref[...] = (xf * inv).astype(o_ref.dtype)


def _sublane_multiple(dtype) -> int:
    # Sublane packing: 8 rows/vreg for 4-byte types, 16 for 2-byte, 32 for 1-byte.
    itemsize = jnp.dtype(dtype).itemsize
    return {4: 8, 2: 16, 1: 32}.get(itemsize, 8)


def l1norm(x, *, target_tile_bytes=4 << 20):
    """L1-normalize each row of x (shape (N, D)) along dim=1 (PyTorch L1Norm)."""
    n, d = x.shape
    itemsize = jnp.dtype(x.dtype).itemsize
    sub = _sublane_multiple(x.dtype)

    if n <= sub:
        # Full-extent block: always legal regardless of sublane packing.
        bn = n
    else:
        # ~target_tile_bytes per input tile.
        bn = max(sub, target_tile_bytes // max(1, d * itemsize))
        # Ensure >= 2 grid steps so v7x's second TensorCore gets work.
        half = ((pl.cdiv(n, 2) + sub - 1) // sub) * sub
        bn = min(bn, half)
        # Round down to the sublane multiple (never below one group).
        bn = max(sub, (bn // sub) * sub)

    grid = (pl.cdiv(n, bn),)

    # Double-buffered in + out footprint, plus headroom for internal scratch.
    tile_bytes = bn * d * itemsize
    vmem_limit = int(max(4 * tile_bytes + (4 << 20), 16 << 20))

    return pl.pallas_call(
        _l1norm_kernel,
        out_shape=jax.ShapeDtypeStruct((n, d), x.dtype),
        grid_spec=pltpu.PrefetchScalarGridSpec(
            num_scalar_prefetch=0,
            grid=grid,
            in_specs=[pl.BlockSpec((bn, d), lambda i: (i, 0))],
            out_specs=pl.BlockSpec((bn, d), lambda i: (i, 0)),
        ),
        compiler_params=pltpu.CompilerParams(
            dimension_semantics=("parallel",),
            vmem_limit_bytes=vmem_limit,
        ),
    )(x)


if __name__ == "__main__":
    key = jax.random.PRNGKey(0)

    # HardNet descriptors: N vectors of dimension D=128.  N deliberately NOT a
    # multiple of the tile/sublane group to exercise the ragged-grid path.
    N, D = 300, 128
    x = jax.random.normal(key, (N, D), dtype=jnp.float32)

    out = jax.block_until_ready(l1norm(x))

    # Reference check (same semantics as the PyTorch module).
    ref = x / (jnp.sum(jnp.abs(x), axis=1, keepdims=True) + EPS)
    assert out.shape == x.shape and out.dtype == x.dtype
    assert jnp.allclose(out, ref, atol=1e-6, rtol=1e-6)

    # bf16 path (dtype-aware sublane rounding, f32 accumulation + f32 scaling).
    xb = jax.random.normal(jax.random.PRNGKey(1), (64, D), dtype=jnp.bfloat16)
    outb = jax.block_until_ready(l1norm(xb))
    refb_f32 = xb.astype(jnp.float32)
    refb = refb_f32 / (jnp.sum(jnp.abs(refb_f32), axis=1, keepdims=True) + EPS)
    assert outb.shape == xb.shape and outb.dtype == xb.dtype
    assert jnp.allclose(outb.astype(jnp.float32), refb, atol=2e-2, rtol=2e-2)

    # Tiny-N path (full-extent block, N < one sublane group).
    xt = jax.random.normal(jax.random.PRNGKey(2), (5, D), dtype=jnp.float32)
    outt = jax.block_until_ready(l1norm(xt))
    reft = xt / (jnp.sum(jnp.abs(xt), axis=1, keepdims=True) + EPS)
    assert jnp.allclose(outt, reft, atol=1e-6, rtol=1e-6)

    print("KERNEL_OK")
</pallas_src>

<mosaic_0001>
module attributes {stable_mosaic.version = 11 : i64} {
  func.func @_l1norm_kernel(%arg0: i32, %arg1: memref<152x128xf32, #tpu.memory_space<vmem>>, %arg2: memref<152x128xf32, #tpu.memory_space<vmem>>) attributes {dimension_semantics = [#tpu.dimension_semantics<parallel>], iteration_bounds = array<i64: 2>, scalar_prefetch = 0 : i64, scratch_operands = 0 : i64, tpu.core_type = #tpu.core_type<tc>, window_params = [{transform_indices = @transform_0, window_bounds = array<i64: 152, 128>}, {transform_indices = @transform_1, window_bounds = array<i64: 152, 128>}]} {
    %c0 = arith.constant 0 : index
    %c0_0 = arith.constant 0 : index
    %0 = vector.load %arg1[%c0, %c0_0] : memref<152x128xf32, #tpu.memory_space<vmem>>, vector<152x128xf32>
    %1 = math.absf %0 : vector<152x128xf32>
    %cst = arith.constant dense<0.000000e+00> : vector<152xf32>
    %2 = vector.multi_reduction <add>, %1, %cst [1] : vector<152x128xf32> to vector<152xf32>
    %3 = vector.shape_cast %2 : vector<152xf32> to vector<152x1xf32>
    %cst_1 = arith.constant 1.000000e-10 : f32
    %4 = vector.broadcast %cst_1 : f32 to vector<152x1xf32>
    %5 = arith.addf %3, %4 : vector<152x1xf32>
    %6 = tpu.reciprocal %5 : vector<152x1xf32> -> vector<152x1xf32>
    %7 = vector.broadcast %6 : vector<152x1xf32> to vector<152x128xf32>
    %8 = arith.mulf %0, %7 : vector<152x128xf32>
    %c0_2 = arith.constant 0 : index
    %c0_3 = arith.constant 0 : index
    %9 = vector.load %arg2[%c0_2, %c0_3] : memref<152x128xf32, #tpu.memory_space<vmem>>, vector<152x128xf32>
    tpu.vector_store %arg2[%c0_2, %c0_3], %8 {strides = array<i32>} : memref<152x128xf32, #tpu.memory_space<vmem>>, vector<152x128xf32>,
    return
  }
  func.func @transform_0(%arg0: i32) -> (i32, i32) {
    %c0_i32 = arith.constant 0 : i32
    %c0_i32_0 = arith.constant 0 : i32
    return %arg0, %c0_i32 : i32, i32
  }
  func.func @transform_1(%arg0: i32) -> (i32, i32) {
    %c0_i32 = arith.constant 0 : i32
    %c0_i32_0 = arith.constant 0 : i32
    return %arg0, %c0_i32 : i32, i32
  }
}

</mosaic_0001>

<llo_original>
// kernel: tpu_custom_call.1
$region0: #{tpu_custom_call.1}
  #allocation0 [shape = 'u32[]', space=smem, size = 0x4, offset = 0x4, fixed_abs, tag = 'smem constant byte address 0x4 - core index']
  #allocation1 [shape = 'u32[72,128]{1,0:T(1,128)}', space=vmem, size = 0x9000, scoped, tag = 'internal scratch']
  %s0 = inlined_call_operand.hbm [shape: f32[300,128], index: 0, kind: input, shape index: {}]
  %s1 = inlined_call_operand.hbm [shape: f32[300,128], index: 1, kind: output, shape index: {}]
  %s2 = sld [smem:[#allocation0]]
  $region41: #{tpu_custom_call.1} parent=0
    _
  %s4 = ssub.s32 1, %s2
  %s5 = scalar_select 0, %s4, %s2
  $region1: #{tpu_custom_call.1} parent=0
    #allocation2 [shape = 'u8[155648]{0}', space=vmem, size = 0x26000, scoped, tag = 'input window, operand 0']
    #allocation3 [shape = 's32[2]{0}', space=sflag, size = 0x8, scoped, tag = 'scoped memory for tpu_custom_call.1']
    #allocation4 [shape = 's32[2]{0}', space=sflag, size = 0x8, scoped, tag = 'scoped memory for tpu_custom_call.1']
    #allocation5 [shape = 'u8[155648]{0}', space=vmem, size = 0x26000, scoped, tag = 'output window, operand 0']
    %6 = vsyncpa [#allocation3], 0
    %s7 = scalar_lea.sflag [#allocation3], 1
    %8 = vsyncpa %s7, 0
    %9 = vsyncpa [#allocation4], 0
    %s10 = scalar_lea.sflag [#allocation4], 1
    %11 = vsyncpa %s10, 0
    loop: start=0, step=1, limit=4
    $region2: #{tpu_custom_call.1} parent=1 // loop_pre_header
      _
    $region3: #{tpu_custom_call.1} parent=1 // loop_header
      %s13 = sphi 0, %s17
      %p14 = scmp.ge.s32.totalorder %s13, 4
      %s23 = sphi 0, %s25
      %s26 = sphi 0, %s23
      %s27 = sphi 0, %s26
      %s43 = sphi 0, %s27
      %s49 = sphi 0, %s51
      %s52 = sphi 0, %s49
      %s53 = sphi 0, %s52
      %s69 = sphi 0, %s53
    $region4: #{tpu_custom_call.1} parent=1 // loop_header_branch
      %16 = sbr.rel (%p14) target = $region8
    $region5: #{tpu_custom_call.1} parent=1 // loop_body
      %s18 = ssub.s32 %s13, 1
      %s19 = ssub.s32 %s13, 2
      %s20 = sadd.s32 %s13, 1
      %s21 = ssub.s32 %s13, %s20
      %p22 = scmp.eq.s32.totalorder %s21, 0
      %s24 = sadd.s32 %s23, 1
      %s25 = scalar_select %p22, %s23, %s24
      %p28 = pneg %p22
      %p29 = scmp.eq.s32.totalorder %s13, 1
      %p30 = por %p28, %p29
      %p31 = scmp.ne.s32.totalorder %s23, %s26
      %p32 = scmp.eq.s32.totalorder %s13, 0
      %p33 = por %p31, %p32
      %p34 = scmp.ne.s32.totalorder %s23, %s26
      %p35 = scmp.eq.s32.totalorder %s18, 1
      %p36 = por %p34, %p35
      %p37 = scmp.ne.s32.totalorder %s26, %s27
      %p38 = scmp.eq.s32.totalorder %s18, 0
      %p39 = por %p37, %p38
      %p40 = scmp.ne.s32.totalorder %s26, %s27
      %p41 = scmp.eq.s32.totalorder %s19, 1
      %p42 = por %p40, %p41
      %p44 = scmp.ne.s32.totalorder %s27, %s43
      %p45 = scmp.eq.s32.totalorder %s19, 0
      %p46 = por %p44, %p45
      %s47 = ssub.s32 %s13, %s20
      %p48 = scmp.eq.s32.totalorder %s47, 0
      %s50 = sadd.s32 %s49, 1
      %s51 = scalar_select %p48, %s49, %s50
      %p54 = pneg %p48
      %p55 = scmp.eq.s32.totalorder %s13, 1
      %p56 = por %p54, %p55
      %p57 = scmp.ne.s32.totalorder %s49, %s52
      %p58 = scmp.eq.s32.totalorder %s13, 0
      %p59 = por %p57, %p58
      %p60 = scmp.ne.s32.totalorder %s49, %s52
      %p61 = scmp.eq.s32.totalorder %s18, 1
      %p62 = por %p60, %p61
      %p63 = scmp.ne.s32.totalorder %s52, %s53
      %p64 = scmp.eq.s32.totalorder %s18, 0
      %p65 = por %p63, %p64
      %p66 = scmp.ne.s32.totalorder %s52, %s53
      %p67 = scmp.eq.s32.totalorder %s19, 1
      %p68 = por %p66, %p67
      %p70 = scmp.ne.s32.totalorder %s53, %s69
      %p71 = scmp.eq.s32.totalorder %s19, 0
      %p72 = por %p70, %p71
      %p73 = scmp.le.s32.totalorder 1, %s13
      %p74 = scmp.lt.s32.totalorder %s13, 3
      %p75 = pnand %p73, %p74
      %p76 = pneg %p75
      // Predicated region
      $region9: #{tpu_custom_call.1} parent=5 // pred_check
        _
      $region10: #{tpu_custom_call.1} parent=5 // pred_check_branch
        %78 = sbr.rel (%p75) target = $region12
      $region11: #{tpu_custom_call.1} parent=5 // pred_region
        %s79 = ssub.s32 %s13, 1
      $region12: #{tpu_custom_call.1} parent=5 // pred_fallthru
        _
      %p80 = scmp.lt.s32.totalorder %s13, 2
      // Predicated region
      $region13: #{tpu_custom_call.1} parent=5 // pred_check
        %p81 = pneg %p80
      $region14: #{tpu_custom_call.1} parent=5 // pred_check_branch
        %83 = sbr.rel (%p81) target = $region16
      $region15: #{tpu_custom_call.1} parent=5 // pred_region
        // Predicated region
        $region17: #{tpu_custom_call.1} parent=15 // pred_check
          %p84 = pneg %p33
        $region18: #{tpu_custom_call.1} parent=15 // pred_check_branch
          %86 = sbr.rel (%p84) target = $region20
        $region19: #{tpu_custom_call.1} parent=15 // pred_region
          %s87 = sand.u32 %s23, 1
          %s88 = scalar_lea.sflag [#allocation3], %s87
          %s89 = sand.u32 %s23, 1
          %s90 = smul.addr %s89, 152
          %s91 = scalar_lea.vmem [#allocation2], %s90
          %s92 = smul.u32 19, %s13
          %94 = vsyncadd %s88, 0
          %s95 = smul.addr %s92, 8
          %s96 = scalar_lea.hbm %s0, %s95
          %s97 = sshll.u32 %s96, 4
          %s98 = int_to_ptr.hbm [resolvable:$true] %s97
          %s99 = sshll.u32 %s91, 4
          %s100 = int_to_ptr.vmem [resolvable:$true] %s99
          %105 = dma.hbm_to_vmem [thread:$0]  %s98, 2432, %s100, %s88, 128, 128, 8
        $region20: #{tpu_custom_call.1} parent=15 // pred_fallthru
          _
      $region16: #{tpu_custom_call.1} parent=5 // pred_fallthru
        _
      %p106 = scmp.le.s32.totalorder 1, %s13
      %p107 = scmp.lt.s32.totalorder %s13, 3
      %p108 = pnand %p106, %p107
      %p109 = pneg %p108
      // Predicated region
      $region21: #{tpu_custom_call.1} parent=5 // pred_check
        _
      $region22: #{tpu_custom_call.1} parent=5 // pred_check_branch
        %111 = sbr.rel (%p108) target = $region24
      $region23: #{tpu_custom_call.1} parent=5 // pred_region
        %s112 = ssub.s32 %s13, 1
        %s113 = sand.u32 %s26, 1
        %s114 = scalar_lea.sflag [#allocation3], %s113
        %s115 = sand.u32 %s26, 1
        %s116 = smul.addr %s115, 152
        %s117 = scalar_lea.vmem [#allocation2], %s116
        // Predicated region
        $region25: #{tpu_custom_call.1} parent=23 // pred_check
          %p118 = pneg %p39
        $region26: #{tpu_custom_call.1} parent=23 // pred_check_branch
          %120 = sbr.rel (%p118) target = $region28
        $region27: #{tpu_custom_call.1} parent=23 // pred_region
          %122 = dma.done %s114, 2432
        $region28: #{tpu_custom_call.1} parent=23 // pred_fallthru
          _
        %s123 = sand.u32 %s26, 1
        %s124 = scalar_lea.sflag [#allocation3], %s123
        %s125 = sand.u32 %s26, 1
        %s126 = smul.addr %s125, 152
        %s127 = scalar_lea.vmem [#allocation2], %s126
        %p128 = pneg %p39
        %p129 = pneg %p36
        %p130 = pneg %p65
        %p131 = pneg %p62
        %s132 = sand.u32 %s52, 1
        %s133 = scalar_lea.sflag [#allocation4], %s132
        %s134 = sand.u32 %s52, 1
        %s135 = smul.addr %s134, 152
        %s136 = scalar_lea.vmem [#allocation5], %s135
        %s137 = smul.u32 19, %s18
        %s138 = smul.u32 19, %s18
        %v139 = vld [vmem:[%s117] sm:$0xff]
        %v140 = vld [vmem:[%s117 + $0x8] sm:$0xff]
        %v141 = vld [vmem:[%s117 + $0x10] sm:$0xff]
        %v142 = vld [vmem:[%s117 + $0x18] sm:$0xff]
        %v143 = vld [vmem:[%s117 + $0x20] sm:$0xff]
        %v144 = vld [vmem:[%s117 + $0x28] sm:$0xff]
        %v145 = vld [vmem:[%s117 + $0x30] sm:$0xff]
        %v146 = vld [vmem:[%s117 + $0x38] sm:$0xff]
        %v147 = vld [vmem:[%s117 + $0x40] sm:$0xff]
        %v148 = vld [vmem:[%s117 + $0x48] sm:$0xff]
        %v149 = vld [vmem:[%s117 + $0x50] sm:$0xff]
        %v150 = vld [vmem:[%s117 + $0x58] sm:$0xff]
        %v151 = vld [vmem:[%s117 + $0x60] sm:$0xff]
        %v152 = vld [vmem:[%s117 + $0x68] sm:$0xff]
        %v153 = vld [vmem:[%s117 + $0x70] sm:$0xff]
        %v154 = vld [vmem:[%s117 + $0x78] sm:$0xff]
        %v155 = vld [vmem:[%s117 + $0x80] sm:$0xff]
        %v156 = vld [vmem:[%s117 + $0x88] sm:$0xff]
        %v157 = vld [vmem:[%s117 + $0x90] sm:$0xff]
        %v158 = vand.u32 2147483647, %v139
        %v159 = vand.u32 2147483647, %v140
        %v160 = vand.u32 2147483647, %v141
        %v161 = vand.u32 2147483647, %v142
        %v162 = vand.u32 2147483647, %v143
        %v163 = vand.u32 2147483647, %v144
        %v164 = vand.u32 2147483647, %v145
        %v165 = vand.u32 2147483647, %v146
        %v166 = vand.u32 2147483647, %v147
        %v167 = vand.u32 2147483647, %v148
        %v168 = vand.u32 2147483647, %v149
        %v169 = vand.u32 2147483647, %v150
        %v170 = vand.u32 2147483647, %v151
        %v171 = vand.u32 2147483647, %v152
        %v172 = vand.u32 2147483647, %v153
        %v173 = vand.u32 2147483647, %v154
        %v174 = vand.u32 2147483647, %v155
        %v175 = vand.u32 2147483647, %v156
        %v176 = vand.u32 2147483647, %v157
        %177 = vadd.xlane.f32.xlu0 %v158
        %v178 = vpop.xlane.xlu0 %177
        %179 = vadd.xlane.f32.xlu0 %v159
        %v180 = vpop.xlane.xlu0 %179
        %181 = vadd.xlane.f32.xlu0 %v160
        %v182 = vpop.xlane.xlu0 %181
        %183 = vadd.xlane.f32.xlu0 %v161
        %v184 = vpop.xlane.xlu0 %183
        %185 = vadd.xlane.f32.xlu0 %v162
        %v186 = vpop.xlane.xlu0 %185
        %187 = vadd.xlane.f32.xlu0 %v163
        %v188 = vpop.xlane.xlu0 %187
        %189 = vadd.xlane.f32.xlu0 %v164
        %v190 = vpop.xlane.xlu0 %189
        %191 = vadd.xlane.f32.xlu0 %v165
        %v192 = vpop.xlane.xlu0 %191
        %193 = vadd.xlane.f32.xlu0 %v166
        %v194 = vpop.xlane.xlu0 %193
        %195 = vadd.xlane.f32.xlu0 %v167
        %v196 = vpop.xlane.xlu0 %195
        %197 = vadd.xlane.f32.xlu0 %v168
        %v198 = vpop.xlane.xlu0 %197
        %199 = vadd.xlane.f32.xlu0 %v169
        %v200 = vpop.xlane.xlu0 %199
        %201 = vadd.xlane.f32.xlu0 %v170
        %v202 = vpop.xlane.xlu0 %201
        %203 = vadd.xlane.f32.xlu0 %v171
        %v204 = vpop.xlane.xlu0 %203
        %205 = vadd.xlane.f32.xlu0 %v172
        %v206 = vpop.xlane.xlu0 %205
        %207 = vadd.xlane.f32.xlu0 %v173
        %v208 = vpop.xlane.xlu0 %207
        %209 = vadd.xlane.f32.xlu0 %v174
        %v210 = vpop.xlane.xlu0 %209
        %211 = vadd.xlane.f32.xlu0 %v175
        %v212 = vpop.xlane.xlu0 %211
        %213 = vadd.xlane.f32.xlu0 %v176
        %v214 = vpop.xlane.xlu0 %213
        %v215 = vadd.f32 %v178, 1e-10
        %v216 = vadd.f32 %v180, 1e-10
        %v217 = vadd.f32 %v182, 1e-10
        %v218 = vadd.f32 %v184, 1e-10
        %v219 = vadd.f32 %v186, 1e-10
        %v220 = vadd.f32 %v188, 1e-10
        %v221 = vadd.f32 %v190, 1e-10
        %v222 = vadd.f32 %v192, 1e-10
        %v223 = vadd.f32 %v194, 1e-10
        %v224 = vadd.f32 %v196, 1e-10
        %v225 = vadd.f32 %v198, 1e-10
        %v226 = vadd.f32 %v200, 1e-10
        %v227 = vadd.f32 %v202, 1e-10
        %v228 = vadd.f32 %v204, 1e-10
        %v229 = vadd.f32 %v206, 1e-10
        %v230 = vadd.f32 %v208, 1e-10
        %v231 = vadd.f32 %v210, 1e-10
        %v232 = vadd.f32 %v212, 1e-10
        %v233 = vadd.f32 %v214, 1e-10
        %v234 = vrcp.pop %v215
        %v235 = vmul.f32 %v215, %v234
        %v236 = vsub.f32 1.0, %v235
        %v237 = vmul.f32 %v234, %v236
        %v238 = vadd.f32 %v234, %v237
        %vm239 = vweird.f32 %v215
        %vm240 = vweird.f32 %v234
        %vm241 = vmor %vm239, %vm240
        %v242 = vsel %vm241, %v234, %v238
        %v243 = vand.u32 2147483647, %v215
        %vm244 = vcmp.eq.f32.partialorder %v243, 8.507059e+37
        %v245 = vand.u32 %v215, 2147483648
        %v246 = vor.u32 1.1754944e-38, %v245
        %v247 = vsel %vm244, %v246, %v242
        %v248 = vrcp.pop %v216
        %v249 = vmul.f32 %v216, %v248
        %v250 = vsub.f32 1.0, %v249
        %v251 = vmul.f32 %v248, %v250
        %v252 = vadd.f32 %v248, %v251
        %vm253 = vweird.f32 %v216
        %vm254 = vweird.f32 %v248
        %vm255 = vmor %vm253, %vm254
        %v256 = vsel %vm255, %v248, %v252
        %v257 = vand.u32 2147483647, %v216
        %vm258 = vcmp.eq.f32.partialorder %v257, 8.507059e+37
        %v259 = vand.u32 %v216, 2147483648
        %v260 = vor.u32 1.1754944e-38, %v259
        %v261 = vsel %vm258, %v260, %v256
        %v262 = vrcp.pop %v217
        %v263 = vmul.f32 %v217, %v262
        %v264 = vsub.f32 1.0, %v263
        %v265 = vmul.f32 %v262, %v264
        %v266 = vadd.f32 %v262, %v265
        %vm267 = vweird.f32 %v217
        %vm268 = vweird.f32 %v262
        %vm269 = vmor %vm267, %vm268
        %v270 = vsel %vm269, %v262, %v266
        %v271 = vand.u32 2147483647, %v217
        %vm272 = vcmp.eq.f32.partialorder %v271, 8.507059e+37
        %v273 = vand.u32 %v217, 2147483648
        %v274 = vor.u32 1.1754944e-38, %v273
        %v275 = vsel %vm272, %v274, %v270
        %v276 = vrcp.pop %v218
        %v277 = vmul.f32 %v218, %v276
        %v278 = vsub.f32 1.0, %v277
        %v279 = vmul.f32 %v276, %v278
        %v280 = vadd.f32 %v276, %v279
        %vm281 = vweird.f32 %v218
        %vm282 = vweird.f32 %v276
        %vm283 = vmor %vm281, %vm282
        %v284 = vsel %vm283, %v276, %v280
        %v285 = vand.u32 2147483647, %v218
        %vm286 = vcmp.eq.f32.partialorder %v285, 8.507059e+37
        %v287 = vand.u32 %v218, 2147483648
        %v288 = vor.u32 1.1754944e-38, %v287
        %v289 = vsel %vm286, %v288, %v284
        %v290 = vrcp.pop %v219
        %v291 = vmul.f32 %v219, %v290
        %v292 = vsub.f32 1.0, %v291
        %v293 = vmul.f32 %v290, %v292
        %v294 = vadd.f32 %v290, %v293
        %vm295 = vweird.f32 %v219
        %vm296 = vweird.f32 %v290
        %vm297 = vmor %vm295, %vm296
        %v298 = vsel %vm297, %v290, %v294
        %v299 = vand.u32 2147483647, %v219
        %vm300 = vcmp.eq.f32.partialorder %v299, 8.507059e+37
        %v301 = vand.u32 %v219, 2147483648
        %v302 = vor.u32 1.1754944e-38, %v301
        %v303 = vsel %vm300, %v302, %v298
        %v304 = vrcp.pop %v220
        %v305 = vmul.f32 %v220, %v304
        %v306 = vsub.f32 1.0, %v305
        %v307 = vmul.f32 %v304, %v306
        %v308 = vadd.f32 %v304, %v307
        %vm309 = vweird.f32 %v220
        %vm310 = vweird.f32 %v304
        %vm311 = vmor %vm309, %vm310
        %v312 = vsel %vm311, %v304, %v308
        %v313 = vand.u32 2147483647, %v220
        %vm314 = vcmp.eq.f32.partialorder %v313, 8.507059e+37
        %v315 = vand.u32 %v220, 2147483648
        %v316 = vor.u32 1.1754944e-38, %v315
        %v317 = vsel %vm314, %v316, %v312
        %v318 = vrcp.pop %v221
        %v319 = vmul.f32 %v221, %v318
        %v320 = vsub.f32 1.0, %v319
        %v321 = vmul.f32 %v318, %v320
        %v322 = vadd.f32 %v318, %v321
        %vm323 = vweird.f32 %v221
        %vm324 = vweird.f32 %v318
        %vm325 = vmor %vm323, %vm324
        %v326 = vsel %vm325, %v318, %v322
        %v327 = vand.u32 2147483647, %v221
        %vm328 = vcmp.eq.f32.partialorder %v327, 8.507059e+37
        %v329 = vand.u32 %v221, 2147483648
        %v330 = vor.u32 1.1754944e-38, %v329
        %v331 = vsel %vm328, %v330, %v326
        %v332 = vrcp.pop %v222
        %v333 = vmul.f32 %v222, %v332
        %v334 = vsub.f32 1.0, %v333
        %v335 = vmul.f32 %v332, %v334
        %v336 = vadd.f32 %v332, %v335
        %vm337 = vweird.f32 %v222
        %vm338 = vweird.f32 %v332
        %vm339 = vmor %vm337, %vm338
        %v340 = vsel %vm339, %v332, %v336
        %v341 = vand.u32 2147483647, %v222
        %vm342 = vcmp.eq.f32.partialorder %v341, 8.507059e+37
        %v343 = vand.u32 %v222, 2147483648
        %v344 = vor.u32 1.1754944e-38, %v343
        %v345 = vsel %vm342, %v344, %v340
        %v346 = vrcp.pop %v223
        %v347 = vmul.f32 %v223, %v346
        %v348 = vsub.f32 1.0, %v347
        %v349 = vmul.f32 %v346, %v348
        %v350 = vadd.f32 %v346, %v349
        %vm351 = vweird.f32 %v223
        %vm352 = vweird.f32 %v346
        %vm353 = vmor %vm351, %vm352
        %v354 = vsel %vm353, %v346, %v350
        %v355 = vand.u32 2147483647, %v223
        %vm356 = vcmp.eq.f32.partialorder %v355, 8.507059e+37
        %v357 = vand.u32 %v223, 2147483648
        %v358 = vor.u32 1.1754944e-38, %v357
        %v359 = vsel %vm356, %v358, %v354
        %v360 = vrcp.pop %v224
        %v361 = vmul.f32 %v224, %v360
        %v362 = vsub.f32 1.0, %v361
        %v363 = vmul.f32 %v360, %v362
        %v364 = vadd.f32 %v360, %v363
        %vm365 = vweird.f32 %v224
        %vm366 = vweird.f32 %v360
        %vm367 = vmor %vm365, %vm366
        %v368 = vsel %vm367, %v360, %v364
        %v369 = vand.u32 2147483647, %v224
        %vm370 = vcmp.eq.f32.partialorder %v369, 8.507059e+37
        %v371 = vand.u32 %v224, 2147483648
        %v372 = vor.u32 1.1754944e-38, %v371
        %v373 = vsel %vm370, %v372, %v368
        %v374 = vrcp.pop %v225
        %v375 = vmul.f32 %v225, %v374
        %v376 = vsub.f32 1.0, %v375
        %v377 = vmul.f32 %v374, %v376
        %v378 = vadd.f32 %v374, %v377
        %vm379 = vweird.f32 %v225
        %vm380 = vweird.f32 %v374
        %vm381 = vmor %vm379, %vm380
        %v382 = vsel %vm381, %v374, %v378
        %v383 = vand.u32 2147483647, %v225
        %vm384 = vcmp.eq.f32.partialorder %v383, 8.507059e+37
        %v385 = vand.u32 %v225, 2147483648
        %v386 = vor.u32 1.1754944e-38, %v385
        %v387 = vsel %vm384, %v386, %v382
        %v388 = vrcp.pop %v226
        %v389 = vmul.f32 %v226, %v388
        %v390 = vsub.f32 1.0, %v389
        %v391 = vmul.f32 %v388, %v390
        %v392 = vadd.f32 %v388, %v391
        %vm393 = vweird.f32 %v226
        %vm394 = vweird.f32 %v388
        %vm395 = vmor %vm393, %vm394
        %v396 = vsel %vm395, %v388, %v392
        %v397 = vand.u32 2147483647, %v226
        %vm398 = vcmp.eq.f32.partialorder %v397, 8.507059e+37
        %v399 = vand.u32 %v226, 2147483648
        %v400 = vor.u32 1.1754944e-38, %v399
        %v401 = vsel %vm398, %v400, %v396
        %v402 = vrcp.pop %v227
        %v403 = vmul.f32 %v227, %v402
        %v404 = vsub.f32 1.0, %v403
        %v405 = vmul.f32 %v402, %v404
        %v406 = vadd.f32 %v402, %v405
        %vm407 = vweird.f32 %v227
        %vm408 = vweird.f32 %v402
        %vm409 = vmor %vm407, %vm408
        %v410 = vsel %vm409, %v402, %v406
        %v411 = vand.u32 2147483647, %v227
        %vm412 = vcmp.eq.f32.partialorder %v411, 8.507059e+37
        %v413 = vand.u32 %v227, 2147483648
        %v414 = vor.u32 1.1754944e-38, %v413
        %v415 = vsel %vm412, %v414, %v410
        %v416 = vrcp.pop %v228
        %v417 = vmul.f32 %v228, %v416
        %v418 = vsub.f32 1.0, %v417
        %v419 = vmul.f32 %v416, %v418
        %v420 = vadd.f32 %v416, %v419
        %vm421 = vweird.f32 %v228
        %vm422 = vweird.f32 %v416
        %vm423 = vmor %vm421, %vm422
        %v424 = vsel %vm423, %v416, %v420
        %v425 = vand.u32 2147483647, %v228
        %vm426 = vcmp.eq.f32.partialorder %v425, 8.507059e+37
        %v427 = vand.u32 %v228, 2147483648
        %v428 = vor.u32 1.1754944e-38, %v427
        %v429 = vsel %vm426, %v428, %v424
        %v430 = vrcp.pop %v229
        %v431 = vmul.f32 %v229, %v430
        %v432 = vsub.f32 1.0, %v431
        %v433 = vmul.f32 %v430, %v432
        %v434 = vadd.f32 %v430, %v433
        %vm435 = vweird.f32 %v229
        %vm436 = vweird.f32 %v430
        %vm437 = vmor %vm435, %vm436
        %v438 = vsel %vm437, %v430, %v434
        %v439 = vand.u32 2147483647, %v229
        %vm440 = vcmp.eq.f32.partialorder %v439, 8.507059e+37
        %v441 = vand.u32 %v229, 2147483648
        %v442 = vor.u32 1.1754944e-38, %v441
        %v443 = vsel %vm440, %v442, %v438
        %v444 = vrcp.pop %v230
        %v445 = vmul.f32 %v230, %v444
        %v446 = vsub.f32 1.0, %v445
        %v447 = vmul.f32 %v444, %v446
        %v448 = vadd.f32 %v444, %v447
        %vm449 = vweird.f32 %v230
        %vm450 = vweird.f32 %v444
        %vm451 = vmor %vm449, %vm450
        %v452 = vsel %vm451, %v444, %v448
        %v453 = vand.u32 2147483647, %v230
        %vm454 = vcmp.eq.f32.partialorder %v453, 8.507059e+37
        %v455 = vand.u32 %v230, 2147483648
        %v456 = vor.u32 1.1754944e-38, %v455
        %v457 = vsel %vm454, %v456, %v452
        %v458 = vrcp.pop %v231
        %v459 = vmul.f32 %v231, %v458
        %v460 = vsub.f32 1.0, %v459
        %v461 = vmul.f32 %v458, %v460
        %v462 = vadd.f32 %v458, %v461
        %vm463 = vweird.f32 %v231
        %vm464 = vweird.f32 %v458
        %vm465 = vmor %vm463, %vm464
        %v466 = vsel %vm465, %v458, %v462
        %v467 = vand.u32 2147483647, %v231
        %vm468 = vcmp.eq.f32.partialorder %v467, 8.507059e+37
        %v469 = vand.u32 %v231, 2147483648
        %v470 = vor.u32 1.1754944e-38, %v469
        %v471 = vsel %vm468, %v470, %v466
        %v472 = vrcp.pop %v232
        %v473 = vmul.f32 %v232, %v472
        %v474 = vsub.f32 1.0, %v473
        %v475 = vmul.f32 %v472, %v474
        %v476 = vadd.f32 %v472, %v475
        %vm477 = vweird.f32 %v232
        %vm478 = vweird.f32 %v472
        %vm479 = vmor %vm477, %vm478
        %v480 = vsel %vm479, %v472, %v476
        %v481 = vand.u32 2147483647, %v232
        %vm482 = vcmp.eq.f32.partialorder %v481, 8.507059e+37
        %v483 = vand.u32 %v232, 2147483648
        %v484 = vor.u32 1.1754944e-38, %v483
        %v485 = vsel %vm482, %v484, %v480
        %v486 = vrcp.pop %v233
        %v487 = vmul.f32 %v233, %v486
        %v488 = vsub.f32 1.0, %v487
        %v489 = vmul.f32 %v486, %v488
        %v490 = vadd.f32 %v486, %v489
        %vm491 = vweird.f32 %v233
        %vm492 = vweird.f32 %v486
        %vm493 = vmor %vm491, %vm492
        %v494 = vsel %vm493, %v486, %v490
        %v495 = vand.u32 2147483647, %v233
        %vm496 = vcmp.eq.f32.partialorder %v495, 8.507059e+37
        %v497 = vand.u32 %v233, 2147483648
        %v498 = vor.u32 1.1754944e-38, %v497
        %v499 = vsel %vm496, %v498, %v494
        %v500 = vmul.f32 %v139, %v247
        %v501 = vmul.f32 %v140, %v261
        %v502 = vmul.f32 %v141, %v275
        %v503 = vmul.f32 %v142, %v289
        %v504 = vmul.f32 %v143, %v303
        %v505 = vmul.f32 %v144, %v317
        %v506 = vmul.f32 %v145, %v331
        %v507 = vmul.f32 %v146, %v345
        %v508 = vmul.f32 %v147, %v359
        %v509 = vmul.f32 %v148, %v373
        %v510 = vmul.f32 %v149, %v387
        %v511 = vmul.f32 %v150, %v401
        %v512 = vmul.f32 %v151, %v415
        %v513 = vmul.f32 %v152, %v429
        %v514 = vmul.f32 %v153, %v443
        %v515 = vmul.f32 %v154, %v457
        %v516 = vmul.f32 %v155, %v471
        %v517 = vmul.f32 %v156, %v485
        %v518 = vmul.f32 %v157, %v499
        %519 = vst [vmem:[%s136] sm:$0xff] %v500
        %520 = vst [vmem:[%s136 + $0x8] sm:$0xff] %v501
        %521 = vst [vmem:[%s136 + $0x10] sm:$0xff] %v502
        %522 = vst [vmem:[%s136 + $0x18] sm:$0xff] %v503
        %523 = vst [vmem:[%s136 + $0x20] sm:$0xff] %v504
        %524 = vst [vmem:[%s136 + $0x28] sm:$0xff] %v505
        %525 = vst [vmem:[%s136 + $0x30] sm:$0xff] %v506
        %526 = vst [vmem:[%s136 + $0x38] sm:$0xff] %v507
        %527 = vst [vmem:[%s136 + $0x40] sm:$0xff] %v508
        %528 = vst [vmem:[%s136 + $0x48] sm:$0xff] %v509
        %529 = vst [vmem:[%s136 + $0x50] sm:$0xff] %v510
        %530 = vst [vmem:[%s136 + $0x58] sm:$0xff] %v511
        %531 = vst [vmem:[%s136 + $0x60] sm:$0xff] %v512
        %532 = vst [vmem:[%s136 + $0x68] sm:$0xff] %v513
        %533 = vst [vmem:[%s136 + $0x70] sm:$0xff] %v514
        %534 = vst [vmem:[%s136 + $0x78] sm:$0xff] %v515
        %535 = vst [vmem:[%s136 + $0x80] sm:$0xff] %v516
        %536 = vst [vmem:[%s136 + $0x88] sm:$0xff] %v517
        %537 = vst [vmem:[%s136 + $0x90] sm:$0xff] %v518
        %s538 = sand.u32 %s52, 1
        %s539 = scalar_lea.sflag [#allocation4], %s538
        %s540 = sand.u32 %s52, 1
        %s541 = smul.addr %s540, 152
        %s542 = scalar_lea.vmem [#allocation5], %s541
        // Predicated region
        $region29: #{tpu_custom_call.1} parent=23 // pred_check
          %p543 = pneg %p62
        $region30: #{tpu_custom_call.1} parent=23 // pred_check_branch
          %545 = sbr.rel (%p543) target = $region32
        $region31: #{tpu_custom_call.1} parent=23 // pred_region
          %s546 = smul.u32 19, %s18
          %548 = vsyncadd %s539, 0
          %s549 = smul.addr %s546, 8
          %s550 = scalar_lea.hbm %s1, %s549
          %s551 = sshll.u32 %s542, 4
          %s552 = int_to_ptr.vmem [resolvable:$true] %s551
          %s553 = sshll.u32 %s550, 4
          %s554 = int_to_ptr.hbm [resolvable:$true] %s553
          %559 = dma.vmem_to_hbm [thread:$0]  %s552, 2432, %s554, %s539, 128, 128, 8
        $region32: #{tpu_custom_call.1} parent=23 // pred_fallthru
          _
      $region24: #{tpu_custom_call.1} parent=5 // pred_fallthru
        _
      %p560 = scmp.le.s32.totalorder 2, %s13
      // Predicated region
      $region33: #{tpu_custom_call.1} parent=5 // pred_check
        %p561 = pneg %p560
      $region34: #{tpu_custom_call.1} parent=5 // pred_check_branch
        %563 = sbr.rel (%p561) target = $region36
      $region35: #{tpu_custom_call.1} parent=5 // pred_region
        %s564 = ssub.s32 %s13, 2
        // Predicated region
        $region37: #{tpu_custom_call.1} parent=35 // pred_check
          %p565 = pneg %p68
        $region38: #{tpu_custom_call.1} parent=35 // pred_check_branch
          %567 = sbr.rel (%p565) target = $region40
        $region39: #{tpu_custom_call.1} parent=35 // pred_region
          %s568 = sand.u32 %s53, 1
          %s569 = scalar_lea.sflag [#allocation4], %s568
          %s570 = sand.u32 %s53, 1
          %s571 = smul.addr %s570, 152
          %s572 = scalar_lea.vmem [#allocation5], %s571
          %574 = dma.done %s569, 2432
        $region40: #{tpu_custom_call.1} parent=35 // pred_fallthru
          _
      $region36: #{tpu_custom_call.1} parent=5 // pred_fallthru
        _
    $region6: #{tpu_custom_call.1} parent=1 // loop_footer
      %s17 = sadd.s32 1, %s13
    $region7: #{tpu_custom_call.1} parent=1 // loop_footer_branch
      %12 = sbr.rel target = $region3
    $region8: #{tpu_custom_call.1} parent=1 // loop_exit
      _
    %575 = vsyncpa [#allocation3], 1
    %s576 = scalar_lea.sflag [#allocation3], 1
    %577 = vsyncpa %s576, 1
    %578 = vsyncpa [#allocation4], 1
    %s579 = scalar_lea.sflag [#allocation4], 1
    %580 = vsyncpa %s579, 1

</llo_original>
